<compile_context>
chip_gen: v7x
topology: tpu7x:2x2x1
jax: 0.10.0
libtpu: 0.0.40
codegen_flags: <defaults>
</compile_context>

<pallas_src>
from functools import partial

import jax
import jax.numpy as jnp
from jax import lax
from jax.experimental import pallas as pl
from jax.experimental.pallas import tpu as pltpu


def _round_up(x: int, m: int) -> int:
    return ((x + m - 1) // m) * m


def _pick_batch_tile(B: int, tb_max: int = 1024) -> int:
    """Largest useful batch tile; >=2 grid programs for moderate B (v7x 2-TC)."""
    if B <= 16:
        return B                                    # single full-batch block
    return min(tb_max, _round_up((B + 1) // 2, 16))  # 16-aligned (bf16 sublane pack)


# ----------------------------- Pallas kernel -------------------------------
def _backbone_kernel(sa_ref, obs_ref,
                     w1s_ref, w1o_ref, w1a_ref, b1_ref, w2_ref, b2_ref,
                     o_ref, *, num_steps):
    # sa_ref : (TB, 2)  int32   [step_count, action_idx+1]
    # obs_ref: (TB, N)  bf16    (values {-1,0,1}, exact in bf16)
    # w1s_ref: (1,  Hp) f32     (step-feature row of W1^T)
    # w1o_ref: (N,  Hp) bf16    (obs rows of W1^T)
    # w1a_ref: (Ap, Hp) bf16    (one-hot rows of W1^T, zero-padded to Ap)
    # b1_ref : (1,  Hp) f32     w2_ref: (Hp, E) bf16   b2_ref: (1, E) f32
    # o_ref  : (TB, E)  bf16    (exact-width output; no caller-side slice)
    TB = o_ref.shape[0]
    Ap = w1a_ref.shape[0]

    sa = sa_ref[...]                                              # (TB, 2) int32
    step_norm = sa[:, 0:1].astype(jnp.float32) / num_steps - 0.5  # (TB, 1) f32
    act_idx = sa[:, 1:2]                                          # (TB, 1) int32

    # one-hot via iota compare (direct bool->bf16 cast; no f32 select)
    lane = lax.broadcasted_iota(jnp.int32, (TB, Ap), 1)
    onehot = (lane == act_idx).astype(jnp.bfloat16)               # (TB, Ap)

    # ---- layer 1: concat eliminated algebraically, bias folded into init ----
    h = step_norm * w1s_ref[...] + b1_ref[...]                    # (TB, Hp) VPU
    h = h + jnp.dot(obs_ref[...], w1o_ref[...], preferred_element_type=jnp.float32)
    h = h + jnp.dot(onehot, w1a_ref[...], preferred_element_type=jnp.float32)
    h = jnp.maximum(h, 0.0)                                       # ReLU, f32

    # ---- layer 2 + ReLU, bf16 store ----------------------------------------
    y = jnp.dot(h.astype(jnp.bfloat16), w2_ref[...],
                preferred_element_type=jnp.float32) + b2_ref[...]
    o_ref[...] = jnp.maximum(y, 0.0).astype(o_ref.dtype)


def backbone_mlp_pallas(sa, obs, w1s, w1o, w1a, b1, w2, b2,
                        *, num_steps, tb_max=1024):
    """Fused Backbone forward: returns (B, E) bf16 embeddings."""
    B = sa.shape[0]
    N = obs.shape[1]
    Hp = w1s.shape[1]
    Ap = w1a.shape[0]
    E = w2.shape[1]

    TB = _pick_batch_tile(B, tb_max)
    grid = (pl.cdiv(B, TB),)

    # Right-sized scoped-VMEM request (weights + double-buffered IO + temporaries).
    w_bytes = 4 * (w1s.size + b1.size + b2.size) + 2 * (w1o.size + w1a.size + w2.size)
    io_bytes = TB * (2 * 4 + N * 2 + E * 2)                 # sa + obs + out per tile
    tmp_bytes = TB * (Ap * 2 + Hp * 4 + Hp * 2)             # onehot + h(f32) + h(bf16)
    vmem_limit = int(max(4 * 1024 * 1024,
                         2 * (2 * w_bytes + 2 * io_bytes + tmp_bytes)))

    kernel = partial(_backbone_kernel, num_steps=float(num_steps))

    return pl.pallas_call(
        kernel,
        out_shape=jax.ShapeDtypeStruct((B, E), jnp.bfloat16),
        grid=grid,
        in_specs=[
            pl.BlockSpec((TB, 2), lambda i: (i, 0)),     # [step, action+1]
            pl.BlockSpec((TB, N), lambda i: (i, 0)),     # obs slice (bf16)
            pl.BlockSpec((1, Hp), lambda i: (0, 0)),     # w1 step row (resident)
            pl.BlockSpec((N, Hp), lambda i: (0, 0)),     # w1 obs rows (resident)
            pl.BlockSpec((Ap, Hp), lambda i: (0, 0)),    # w1 one-hot rows (resident)
            pl.BlockSpec((1, Hp), lambda i: (0, 0)),     # b1
            pl.BlockSpec((Hp, E), lambda i: (0, 0)),     # w2^T (resident)
            pl.BlockSpec((1, E), lambda i: (0, 0)),      # b2
        ],
        out_specs=pl.BlockSpec((TB, E), lambda i: (i, 0)),
        compiler_params=pltpu.CompilerParams(
            dimension_semantics=("parallel",),           # shard batch across v7x TCs
            vmem_limit_bytes=vmem_limit,
        ),
    )(sa, obs, w1s, w1o, w1a, b1, w2, b2)


# --------------------------- Backbone (JAX side) ---------------------------
class BackbonePallas:
    def __init__(self, num_nodes, num_steps, embedding_size, player_type,
                 hidden_size, key):
        self.num_nodes = num_nodes
        self.num_steps = num_steps
        self.embedding_size = embedding_size
        self.player_type = player_type
        self.hidden_size = hidden_size

        d_in = num_nodes + 1 + (num_nodes * 2 + 1)
        k1, k2, k3, k4 = jax.random.split(key, 4)
        # Deterministic synthetic params; shapes mirror nn.Linear (out, in) / (out,)
        self.w1 = jax.random.normal(k1, (hidden_size, d_in), jnp.float32) * 0.1
        self.b1 = jax.random.normal(k2, (hidden_size,), jnp.float32) * 0.1
        self.w2 = jax.random.normal(k3, (embedding_size, hidden_size), jnp.float32) * 0.1
        self.b2 = jax.random.normal(k4, (embedding_size,), jnp.float32) * 0.1

        # ---- one-time packing: transpose, split, zero-pad hidden to 128 lanes ----
        N = num_nodes
        A = 2 * num_nodes + 1
        Hp = _round_up(hidden_size, 128)
        Ap = _round_up(A, 128)
        E = embedding_size
        self._Hp, self._Ap = Hp, Ap

        w1_t = self.w1.T                                  # (d_in, hidden): rows = features
        self._w1s = (jnp.zeros((1, Hp), jnp.float32)
                     .at[0, :hidden_size].set(w1_t[0]))                        # f32
        self._w1o = (jnp.zeros((N, Hp), jnp.float32)
                     .at[:, :hidden_size].set(w1_t[1:1 + N])
                     .astype(jnp.bfloat16))
        self._w1a = (jnp.zeros((Ap, Hp), jnp.float32)
                     .at[:A, :hidden_size].set(w1_t[1 + N:])
                     .astype(jnp.bfloat16))
        self._b1p = (jnp.zeros((1, Hp), jnp.float32)
                     .at[0, :hidden_size].set(self.b1))
        self._w2p = (jnp.zeros((Hp, E), jnp.float32)
                     .at[:hidden_size, :].set(self.w2.T)
                     .astype(jnp.bfloat16))
        self._b2p = self.b2.reshape(1, E)

    def __call__(self, step_count, observed_node_owners, actions_seq):
        # step_count:            (B, 1)        int
        # observed_node_owners:  (B, P, T, N)  int
        # actions_seq:           (B, P, T)     int
        # TODO(synk): the player-type / last-timestep slicing stays as plain JAX
        # indexing (trivially cheap, fuses with the casts); everything else is
        # fused in the single pallas_call.
        obs = observed_node_owners[..., self.player_type, -1, :].astype(jnp.bfloat16)  # (B, N)
        act = actions_seq[..., self.player_type, -1:].astype(jnp.int32) + 1            # (B, 1)
        sa = jnp.concatenate([step_count.astype(jnp.int32), act], axis=-1)             # (B, 2)

        return backbone_mlp_pallas(
            sa, obs,
            self._w1s, self._w1o, self._w1a, self._b1p, self._w2p, self._b2p,
            num_steps=self.num_steps,
        )                                                   # (B, E) bf16, no re-slice


# ------------------------------- references --------------------------------
def reference_forward_f32(model, step_count, observed_node_owners, actions_seq):
    """Exact f32 math of the original PyTorch module."""
    step_norm = step_count.astype(jnp.float32) / model.num_steps - 0.5
    obs = observed_node_owners[..., model.player_type, -1, :].astype(jnp.float32)
    acts = (actions_seq[..., model.player_type, -1] + 1).astype(jnp.int32)
    act_oh = jax.nn.one_hot(acts, model.num_nodes * 2 + 1, dtype=jnp.float32)
    x = jnp.concatenate([step_norm, obs, act_oh], axis=-1)
    h = jnp.maximum(x @ model.w1.T + model.b1, 0.0)
    return jnp.maximum(h @ model.w2.T + model.b2, 0.0)


def reference_forward_bf16(model, step_count, observed_node_owners, actions_seq):
    """Same math with the kernel's bf16 quantization (tight-tolerance check)."""
    N = model.num_nodes
    step_norm = step_count.astype(jnp.float32) / model.num_steps - 0.5
    obs = observed_node_owners[..., model.player_type, -1, :].astype(jnp.bfloat16)
    acts = (actions_seq[..., model.player_type, -1] + 1).astype(jnp.int32)
    act_oh = jax.nn.one_hot(acts, 2 * N + 1, dtype=jnp.bfloat16)

    w1_t = model.w1.T
    h = step_norm * w1_t[0][None, :] + model.b1
    h = h + jnp.dot(obs, w1_t[1:1 + N].astype(jnp.bfloat16),
                    preferred_element_type=jnp.float32)
    h = h + jnp.dot(act_oh, w1_t[1 + N:].astype(jnp.bfloat16),
                    preferred_element_type=jnp.float32)
    h = jnp.maximum(h, 0.0)
    y = jnp.dot(h.astype(jnp.bfloat16), model.w2.T.astype(jnp.bfloat16),
                preferred_element_type=jnp.float32) + model.b2
    return jnp.maximum(y, 0.0)


def _check(model, step_count, observed_node_owners, actions_seq):
    out = jax.block_until_ready(model(step_count, observed_node_owners, actions_seq))
    assert out.shape == (step_count.shape[0], model.embedding_size)
    out_f = out.astype(jnp.float32)
    ref_q = reference_forward_bf16(model, step_count, observed_node_owners, actions_seq)
    ref_f = reference_forward_f32(model, step_count, observed_node_owners, actions_seq)
    assert jnp.allclose(out_f, ref_q, atol=1e-2, rtol=1e-2)   # vs identically-quantized math
    assert jnp.allclose(out_f, ref_f, atol=5e-2, rtol=5e-2)   # vs full-f32 PyTorch math


if __name__ == "__main__":
    # Small, forward-consistent shapes
    num_nodes = 8
    num_steps = 10
    embedding_size = 32
    hidden_size = 32
    player_type = 0
    P, T = 2, 4  # players, sequence length

    key = jax.random.PRNGKey(0)
    k_model, k_data = jax.random.split(key, 2)

    model = BackbonePallas(num_nodes, num_steps, embedding_size,
                           player_type, hidden_size, k_model)

    def make_inputs(k, B):
        ks, ko, ka = jax.random.split(k, 3)
        step_count = jax.random.randint(ks, (B, 1), 0, num_steps, dtype=jnp.int32)
        observed = jax.random.randint(ko, (B, P, T, num_nodes), -1, 2, dtype=jnp.int32)
        # actions in [-1, 2*num_nodes - 1] so (actions + 1) in [0, 2*num_nodes]
        actions = jax.random.randint(ka, (B, P, T), -1, 2 * num_nodes, dtype=jnp.int32)
        return step_count, observed, actions

    k_small, k_large = jax.random.split(k_data)
    # tiny batch (single grid program)
    _check(model, *make_inputs(k_small, 2))
    # moderate batch: exercises multi-program grid + ragged last tile
    _check(model, *make_inputs(k_large, 300))

    print("KERNEL_OK")
</pallas_src>

<mosaic_0001>
module attributes {stable_mosaic.version = 11 : i64} {
  func.func @_backbone_kernel(%arg0: i32, %arg1: memref<2x2xi32, #tpu.memory_space<vmem>>, %arg2: memref<2x8xbf16, #tpu.memory_space<vmem>>, %arg3: memref<1x128xf32, #tpu.memory_space<vmem>>, %arg4: memref<8x128xbf16, #tpu.memory_space<vmem>>, %arg5: memref<128x128xbf16, #tpu.memory_space<vmem>>, %arg6: memref<1x128xf32, #tpu.memory_space<vmem>>, %arg7: memref<128x32xbf16, #tpu.memory_space<vmem>>, %arg8: memref<1x32xf32, #tpu.memory_space<vmem>>, %arg9: memref<2x32xbf16, #tpu.memory_space<vmem>>) attributes {dimension_semantics = [#tpu.dimension_semantics<parallel>], iteration_bounds = array<i64: 1>, scalar_prefetch = 0 : i64, scratch_operands = 0 : i64, tpu.core_type = #tpu.core_type<tc>, window_params = [{transform_indices = @transform_0, window_bounds = array<i64: 2, 2>}, {transform_indices = @transform_1, window_bounds = array<i64: 2, 8>}, {pipeline_mode = #tpu.pipeline_mode<synchronous>, transform_indices = @transform_2, window_bounds = array<i64: 1, 128>}, {pipeline_mode = #tpu.pipeline_mode<synchronous>, transform_indices = @transform_3, window_bounds = array<i64: 8, 128>}, {pipeline_mode = #tpu.pipeline_mode<synchronous>, transform_indices = @transform_4, window_bounds = array<i64: 128, 128>}, {pipeline_mode = #tpu.pipeline_mode<synchronous>, transform_indices = @transform_5, window_bounds = array<i64: 1, 128>}, {pipeline_mode = #tpu.pipeline_mode<synchronous>, transform_indices = @transform_6, window_bounds = array<i64: 128, 32>}, {pipeline_mode = #tpu.pipeline_mode<synchronous>, transform_indices = @transform_7, window_bounds = array<i64: 1, 32>}, {transform_indices = @transform_8, window_bounds = array<i64: 2, 32>}]} {
    %c0 = arith.constant 0 : index
    %c0_0 = arith.constant 0 : index
    %0 = vector.load %arg1[%c0, %c0_0] : memref<2x2xi32, #tpu.memory_space<vmem>>, vector<2x2xi32>
    %1 = vector.extract_strided_slice %0 {offsets = [0, 0], sizes = [2, 1], strides = [1, 1]} : vector<2x2xi32> to vector<2x1xi32>
    %2 = arith.sitofp %1 : vector<2x1xi32> to vector<2x1xf32>
    %cst = arith.constant 1.000000e+01 : f32
    %3 = vector.broadcast %cst : f32 to vector<2x1xf32>
    %4 = arith.divf %2, %3 : vector<2x1xf32>
    %cst_1 = arith.constant 5.000000e-01 : f32
    %5 = vector.broadcast %cst_1 : f32 to vector<2x1xf32>
    %6 = arith.subf %4, %5 : vector<2x1xf32>
    %7 = vector.extract_strided_slice %0 {offsets = [0, 1], sizes = [2, 1], strides = [1, 1]} : vector<2x2xi32> to vector<2x1xi32>
    %8 = tpu.iota {dimensions = array<i32: 1>} : vector<2x128xi32>
    %9 = vector.broadcast %7 : vector<2x1xi32> to vector<2x128xi32>
    %10 = arith.cmpi eq, %8, %9 : vector<2x128xi32>
    %11 = arith.extui %10 : vector<2x128xi1> to vector<2x128xi32>
    %12 = arith.sitofp %11 : vector<2x128xi32> to vector<2x128xf32>
    %13 = arith.truncf %12 : vector<2x128xf32> to vector<2x128xbf16>
    %c0_2 = arith.constant 0 : index
    %c0_3 = arith.constant 0 : index
    %14 = vector.load %arg3[%c0_2, %c0_3] : memref<1x128xf32, #tpu.memory_space<vmem>>, vector<1x128xf32>
    %15 = vector.broadcast %6 : vector<2x1xf32> to vector<2x128xf32>
    %16 = vector.broadcast %14 : vector<1x128xf32> to vector<2x128xf32>
    %17 = arith.mulf %15, %16 : vector<2x128xf32>
    %c0_4 = arith.constant 0 : index
    %c0_5 = arith.constant 0 : index
    %18 = vector.load %arg6[%c0_4, %c0_5] : memref<1x128xf32, #tpu.memory_space<vmem>>, vector<1x128xf32>
    %19 = vector.broadcast %18 : vector<1x128xf32> to vector<2x128xf32>
    %20 = arith.addf %17, %19 : vector<2x128xf32>
    %c0_6 = arith.constant 0 : index
    %c0_7 = arith.constant 0 : index
    %21 = vector.load %arg2[%c0_6, %c0_7] : memref<2x8xbf16, #tpu.memory_space<vmem>>, vector<2x8xbf16>
    %c0_8 = arith.constant 0 : index
    %c0_9 = arith.constant 0 : index
    %22 = vector.load %arg4[%c0_8, %c0_9] : memref<8x128xbf16, #tpu.memory_space<vmem>>, vector<8x128xbf16>
    %cst_10 = arith.constant dense<0.000000e+00> : vector<2x128xf32>
    %23 = tpu.matmul %21, %22, %cst_10 {dimension_numbers = #tpu.dot_dimension_numbers<[1], [0], [0], [1], [0, 0, 1, 1], [], []>} : vector<2x8xbf16>, vector<8x128xbf16>, vector<2x128xf32> -> vector<2x128xf32>
    %24 = arith.addf %20, %23 : vector<2x128xf32>
    %c0_11 = arith.constant 0 : index
    %c0_12 = arith.constant 0 : index
    %25 = vector.load %arg5[%c0_11, %c0_12] : memref<128x128xbf16, #tpu.memory_space<vmem>>, vector<128x128xbf16>
    %cst_13 = arith.constant dense<0.000000e+00> : vector<2x128xf32>
    %26 = tpu.matmul %13, %25, %cst_13 {dimension_numbers = #tpu.dot_dimension_numbers<[1], [0], [0], [1], [0, 0, 1, 1], [], []>} : vector<2x128xbf16>, vector<128x128xbf16>, vector<2x128xf32> -> vector<2x128xf32>
    %27 = arith.addf %24, %26 : vector<2x128xf32>
    %cst_14 = arith.constant 0.000000e+00 : f32
    %28 = vector.broadcast %cst_14 : f32 to vector<2x128xf32>
    %29 = arith.maximumf %27, %28 : vector<2x128xf32>
    %30 = arith.truncf %29 : vector<2x128xf32> to vector<2x128xbf16>
    %c0_15 = arith.constant 0 : index
    %c0_16 = arith.constant 0 : index
    %31 = vector.load %arg7[%c0_15, %c0_16] : memref<128x32xbf16, #tpu.memory_space<vmem>>, vector<128x32xbf16>
    %cst_17 = arith.constant dense<0.000000e+00> : vector<2x32xf32>
    %32 = tpu.matmul %30, %31, %cst_17 {dimension_numbers = #tpu.dot_dimension_numbers<[1], [0], [0], [1], [0, 0, 1, 1], [], []>} : vector<2x128xbf16>, vector<128x32xbf16>, vector<2x32xf32> -> vector<2x32xf32>
    %c0_18 = arith.constant 0 : index
    %c0_19 = arith.constant 0 : index
    %33 = vector.load %arg8[%c0_18, %c0_19] : memref<1x32xf32, #tpu.memory_space<vmem>>, vector<1x32xf32>
    %34 = vector.broadcast %33 : vector<1x32xf32> to vector<2x32xf32>
    %35 = arith.addf %32, %34 : vector<2x32xf32>
    %cst_20 = arith.constant 0.000000e+00 : f32
    %36 = vector.broadcast %cst_20 : f32 to vector<2x32xf32>
    %37 = arith.maximumf %35, %36 : vector<2x32xf32>
    %38 = arith.truncf %37 : vector<2x32xf32> to vector<2x32xbf16>
    %c0_21 = arith.constant 0 : index
    %c0_22 = arith.constant 0 : index
    %39 = vector.load %arg9[%c0_21, %c0_22] : memref<2x32xbf16, #tpu.memory_space<vmem>>, vector<2x32xbf16>
    tpu.vector_store %arg9[%c0_21, %c0_22], %38 {strides = array<i32>} : memref<2x32xbf16, #tpu.memory_space<vmem>>, vector<2x32xbf16>,
    return
  }
  func.func @transform_0(%arg0: i32) -> (i32, i32) {
    %c0_i32 = arith.constant 0 : i32
    %c0_i32_0 = arith.constant 0 : i32
    return %arg0, %c0_i32 : i32, i32
  }
  func.func @transform_1(%arg0: i32) -> (i32, i32) {
    %c0_i32 = arith.constant 0 : i32
    %c0_i32_0 = arith.constant 0 : i32
    return %arg0, %c0_i32 : i32, i32
  }
  func.func @transform_2(%arg0: i32) -> (i32, i32) {
    %c0_i32 = arith.constant 0 : i32
    %c0_i32_0 = arith.constant 0 : i32
    %c0_i32_1 = arith.constant 0 : i32
    return %c0_i32, %c0_i32_0 : i32, i32
  }
  func.func @transform_3(%arg0: i32) -> (i32, i32) {
    %c0_i32 = arith.constant 0 : i32
    %c0_i32_0 = arith.constant 0 : i32
    %c0_i32_1 = arith.constant 0 : i32
    return %c0_i32, %c0_i32_0 : i32, i32
  }
  func.func @transform_4(%arg0: i32) -> (i32, i32) {
    %c0_i32 = arith.constant 0 : i32
    %c0_i32_0 = arith.constant 0 : i32
    %c0_i32_1 = arith.constant 0 : i32
    return %c0_i32, %c0_i32_0 : i32, i32
  }
  func.func @transform_5(%arg0: i32) -> (i32, i32) {
    %c0_i32 = arith.constant 0 : i32
    %c0_i32_0 = arith.constant 0 : i32
    %c0_i32_1 = arith.constant 0 : i32
    return %c0_i32, %c0_i32_0 : i32, i32
  }
  func.func @transform_6(%arg0: i32) -> (i32, i32) {
    %c0_i32 = arith.constant 0 : i32
    %c0_i32_0 = arith.constant 0 : i32
    %c0_i32_1 = arith.constant 0 : i32
    return %c0_i32, %c0_i32_0 : i32, i32
  }
  func.func @transform_7(%arg0: i32) -> (i32, i32) {
    %c0_i32 = arith.constant 0 : i32
    %c0_i32_0 = arith.constant 0 : i32
    %c0_i32_1 = arith.constant 0 : i32
    return %c0_i32, %c0_i32_0 : i32, i32
  }
  func.func @transform_8(%arg0: i32) -> (i32, i32) {
    %c0_i32 = arith.constant 0 : i32
    %c0_i32_0 = arith.constant 0 : i32
    return %arg0, %c0_i32 : i32, i32
  }
}

</mosaic_0001>

<llo_original>
// kernel: tpu_custom_call.1
$region0: #{tpu_custom_call.1}
  #allocation0 [shape = 'u32[]', space=smem, size = 0x4, offset = 0x4, fixed_abs, tag = 'smem constant byte address 0x4 - core index']
  #allocation1 [shape = 'u32[144,128]{1,0:T(1,128)}', space=vmem, size = 0x12000, scoped, tag = 'internal scratch']
  %s0 = inlined_call_operand.vmem [shape: s32[2,2], index: 0, kind: input, shape index: {}]
  %s1 = inlined_call_operand.vmem [shape: bf16[2,8], index: 1, kind: input, shape index: {}]
  %s2 = inlined_call_operand.vmem [shape: f32[1,128], index: 2, kind: input, shape index: {}]
  %s3 = inlined_call_operand.vmem [shape: bf16[8,128], index: 3, kind: input, shape index: {}]
  %s4 = inlined_call_operand.vmem [shape: bf16[128,128], index: 4, kind: input, shape index: {}]
  %s5 = inlined_call_operand.vmem [shape: f32[1,128], index: 5, kind: input, shape index: {}]
  %s6 = inlined_call_operand.vmem [shape: bf16[128,32], index: 6, kind: input, shape index: {}]
  %s7 = inlined_call_operand.vmem [shape: f32[1,32], index: 7, kind: input, shape index: {}]
  %s8 = inlined_call_operand.hbm [shape: bf16[2,32], index: 8, kind: output, shape index: {}]
  %s9 = sld [smem:[#allocation0]]
  $region42: #{tpu_custom_call.1} parent=0
    _
  %s11 = ssub.s32 1, %s9
  %s12 = scalar_select 0, %s11, %s9
  $region1: #{tpu_custom_call.1} parent=0
    #allocation2 [shape = 'u8[512]{0}', space=vmem, size = 0x400, scoped, tag = 'output window, operand 0, single buffered']
    #allocation3 [shape = 's32[1]{0}', space=sflag, size = 0x4, scoped, tag = 'scoped memory for tpu_custom_call.1']
    %13 = vsyncpa [#allocation3], 0
    // Predicated region
    $region2: #{tpu_custom_call.1} parent=1 // pred_check
      _
    $region3: #{tpu_custom_call.1} parent=1 // pred_check_branch
      %15 = sbr.rel (0) target = $region5
    $region4: #{tpu_custom_call.1} parent=1 // pred_region
      _
    $region5: #{tpu_custom_call.1} parent=1 // pred_fallthru
      _
    // Predicated region
    $region6: #{tpu_custom_call.1} parent=1 // pred_check
      _
    $region7: #{tpu_custom_call.1} parent=1 // pred_check_branch
      %17 = sbr.rel (0) target = $region9
    $region8: #{tpu_custom_call.1} parent=1 // pred_region
      _
    $region9: #{tpu_custom_call.1} parent=1 // pred_fallthru
      _
    // Predicated region
    $region10: #{tpu_custom_call.1} parent=1 // pred_check
      _
    $region11: #{tpu_custom_call.1} parent=1 // pred_check_branch
      %19 = sbr.rel (0) target = $region13
    $region12: #{tpu_custom_call.1} parent=1 // pred_region
      _
    $region13: #{tpu_custom_call.1} parent=1 // pred_fallthru
      _
    // Predicated region
    $region14: #{tpu_custom_call.1} parent=1 // pred_check
      _
    $region15: #{tpu_custom_call.1} parent=1 // pred_check_branch
      %21 = sbr.rel (0) target = $region17
    $region16: #{tpu_custom_call.1} parent=1 // pred_region
      _
    $region17: #{tpu_custom_call.1} parent=1 // pred_fallthru
      _
    // Predicated region
    $region18: #{tpu_custom_call.1} parent=1 // pred_check
      _
    $region19: #{tpu_custom_call.1} parent=1 // pred_check_branch
      %23 = sbr.rel (0) target = $region21
    $region20: #{tpu_custom_call.1} parent=1 // pred_region
      _
    $region21: #{tpu_custom_call.1} parent=1 // pred_fallthru
      _
    // Predicated region
    $region22: #{tpu_custom_call.1} parent=1 // pred_check
      _
    $region23: #{tpu_custom_call.1} parent=1 // pred_check_branch
      %25 = sbr.rel (0) target = $region25
    $region24: #{tpu_custom_call.1} parent=1 // pred_region
      _
    $region25: #{tpu_custom_call.1} parent=1 // pred_fallthru
      _
    // Predicated region
    $region26: #{tpu_custom_call.1} parent=1 // pred_check
      _
    $region27: #{tpu_custom_call.1} parent=1 // pred_check_branch
      %27 = sbr.rel (0) target = $region29
    $region28: #{tpu_custom_call.1} parent=1 // pred_region
      _
    $region29: #{tpu_custom_call.1} parent=1 // pred_fallthru
      _
    // Predicated region
    $region30: #{tpu_custom_call.1} parent=1 // pred_check
      _
    $region31: #{tpu_custom_call.1} parent=1 // pred_check_branch
      %29 = sbr.rel (0) target = $region33
    $region32: #{tpu_custom_call.1} parent=1 // pred_region
      _
    $region33: #{tpu_custom_call.1} parent=1 // pred_fallthru
      _
    %v31 = vld [vmem:[%s0] sm:$0x3]
    %v32 = vcvt.s32.f32 %v31
    %v33 = vrcp.pop 10.0
    %v34 = vmul.f32 %v32, %v33
    %v35 = vsub.f32 %v34, 0.5
    %v36 = vlaneseq
    %v37 = vand.u32 %v36, 127
    %38 = vset.pattern.permute.xlu0 1
    %39 = vperm.xlu0 %38, %v31
    %v40 = vpop.permute.xlu0 %39
    %vm41 = vcmp.eq.s32.totalorder %v37, %v40
    %v42 = vsel %vm41, 1, 0
    %v43 = vcvt.s32.f32 %v42
    %v44 = vpack.c.bf16 %v43, %v43
    %v45 = vld [vmem:[%s2] sm:$0x1]
    %47 = vset.pattern.permute.xlu0 0
    %48 = vperm.xlu0 %47, %v35
    %v49 = vpop.permute.xlu0 %48
    %v52 = vlaneseq
    %v53 = vshrl.u32 %v52, 7
    %v54 = vsub.s32 0, %v53
    %v55 = vrot.slane %v45, %v54
    %v57 = vmul.f32 %v49, %v55
    %v58 = vld [vmem:[%s5] sm:$0x1]
    %v60 = vlaneseq
    %v61 = vshrl.u32 %v60, 7
    %v62 = vsub.s32 0, %v61
    %v63 = vrot.slane %v58, %v62
    %v65 = vadd.f32 %v57, %v63
    %v66 = vld [vmem:[%s1] sm:$0x1]
    %v67 = vld [vmem:[%s3] sm:$0xf]
    %vm68 = vcmask 64512
    %v70 = vsel %vm68, %v66, 0
    %vm72 = vcmask 1043456
    %v74 = vsel %vm72, %v67, 0
    %76 = vmatprep.subr.bf16.mxu0 0
    %77 = vmatpush1.bf16.msra.mxu0 %v74
    %78 = vmatprep.subr.bf16.mxu0 0
    %79 = vmatpush1.bf16.msra.mxu0 0
    %80 = vmatprep.subr.bf16.mxu0 0
    %81 = vmatpush1.bf16.msra.mxu0 0
    %82 = vmatprep.subr.bf16.mxu0 0
    %83 = vmatpush1.bf16.msra.mxu0 0
    %84 = vmatprep.subr.bf16.mxu0 0
    %85 = vmatpush1.bf16.msra.mxu0 0
    %86 = vmatprep.subr.bf16.mxu0 0
    %87 = vmatpush1.bf16.msra.mxu0 0
    %88 = vmatprep.subr.bf16.mxu0 0
    %89 = vmatpush1.bf16.msra.mxu0 0
    %90 = vmatprep.subr.bf16.mxu0 0
    %91 = vmatpush1.bf16.msra.mxu0 0
    %92 = vmatprep.subr.bf16.mxu0 0
    %93 = vmatpush1.bf16.msra.mxu0 0
    %94 = vmatprep.subr.bf16.mxu0 0
    %95 = vmatpush1.bf16.msra.mxu0 0
    %96 = vmatprep.subr.bf16.mxu0 0
    %97 = vmatpush1.bf16.msra.mxu0 0
    %98 = vmatprep.subr.bf16.mxu0 0
    %99 = vmatpush1.bf16.msra.mxu0 0
    %100 = vmatprep.subr.bf16.mxu0 0
    %101 = vmatpush1.bf16.msra.mxu0 0
    %102 = vmatprep.subr.bf16.mxu0 0
    %103 = vmatpush1.bf16.msra.mxu0 0
    %104 = vmatprep.subr.bf16.mxu0 0
    %105 = vmatpush1.bf16.msra.mxu0 0
    %106 = vmatprep.subr.bf16.mxu0 0
    %107 = vmatpush1.bf16.msra.mxu0 0
    %108 = vmatprep.mubr.bf16.mxu0 0
    %109 = vmatmul.mubr.bf16.gmra.mrb[0].mxu0 %v70
    %v110 = vpop.f32.mrb[0].mxu0
    %v111 = vadd.f32 0.0, %v110
    %v112 = vpop.f32.mrb[0].mxu0
    %v113 = vpop.f32.mrb[0].mxu0
    %v114 = vpop.f32.mrb[0].mxu0
    %115 = vdwg.mxu0
    %v116 = vadd.f32 %v65, %v111
    %v117 = vld [vmem:[%s4] sm:$0xf]
    %v118 = vld [vmem:[%s4 + $0x4] sm:$0xf]
    %v119 = vld [vmem:[%s4 + $0x8] sm:$0xf]
    %v120 = vld [vmem:[%s4 + $0xc] sm:$0xf]
    %v121 = vld [vmem:[%s4 + $0x10] sm:$0xf]
    %v122 = vld [vmem:[%s4 + $0x14] sm:$0xf]
    %v123 = vld [vmem:[%s4 + $0x18] sm:$0xf]
    %v124 = vld [vmem:[%s4 + $0x1c] sm:$0xf]
    %v125 = vld [vmem:[%s4 + $0x20] sm:$0xf]
    %v126 = vld [vmem:[%s4 + $0x24] sm:$0xf]
    %v127 = vld [vmem:[%s4 + $0x28] sm:$0xf]
    %v128 = vld [vmem:[%s4 + $0x2c] sm:$0xf]
    %v129 = vld [vmem:[%s4 + $0x30] sm:$0xf]
    %v130 = vld [vmem:[%s4 + $0x34] sm:$0xf]
    %v131 = vld [vmem:[%s4 + $0x38] sm:$0xf]
    %v132 = vld [vmem:[%s4 + $0x3c] sm:$0xf]
    %v149 = vunpack.c.l.b16 %v117
    %v150 = vunpack.c.l.b16 %v118
    %v151 = vunpack.c.l.b16 %v119
    %v152 = vunpack.c.l.b16 %v120
    %v153 = vunpack.c.l.b16 %v121
    %v154 = vunpack.c.l.b16 %v122
    %v155 = vunpack.c.l.b16 %v123
    %v156 = vunpack.c.l.b16 %v124
    %v157 = vunpack.c.l.b16 %v125
    %v158 = vunpack.c.l.b16 %v126
    %v159 = vunpack.c.l.b16 %v127
    %v160 = vunpack.c.l.b16 %v128
    %v161 = vunpack.c.l.b16 %v129
    %v162 = vunpack.c.l.b16 %v130
    %v163 = vunpack.c.l.b16 %v131
    %v164 = vunpack.c.l.b16 %v132
    %v165 = vpack.c.b16 %v150, %v149
    %v166 = vpack.c.b16 %v152, %v151
    %v167 = vpack.c.b16 %v154, %v153
    %v168 = vpack.c.b16 %v156, %v155
    %v169 = vpack.c.b16 %v158, %v157
    %v170 = vpack.c.b16 %v160, %v159
    %v171 = vpack.c.b16 %v162, %v161
    %v172 = vpack.c.b16 %v164, %v163
    %181 = vmatprep.subr.bf16.mxu0 0
    %182 = vmatpush1.bf16.msra.mxu0 %v165
    %183 = vmatprep.subr.bf16.mxu0 0
    %184 = vmatpush1.bf16.msra.mxu0 %v166
    %185 = vmatprep.subr.bf16.mxu0 0
    %186 = vmatpush1.bf16.msra.mxu0 %v167
    %187 = vmatprep.subr.bf16.mxu0 0
    %188 = vmatpush1.bf16.msra.mxu0 %v168
    %189 = vmatprep.subr.bf16.mxu0 0
    %190 = vmatpush1.bf16.msra.mxu0 %v169
    %191 = vmatprep.subr.bf16.mxu0 0
    %192 = vmatpush1.bf16.msra.mxu0 %v170
    %193 = vmatprep.subr.bf16.mxu0 0
    %194 = vmatpush1.bf16.msra.mxu0 %v171
    %195 = vmatprep.subr.bf16.mxu0 0
    %196 = vmatpush1.bf16.msra.mxu0 %v172
    %197 = vmatprep.subr.bf16.mxu0 0
    %198 = vmatpush1.bf16.msra.mxu0 0
    %199 = vmatprep.subr.bf16.mxu0 0
    %200 = vmatpush1.bf16.msra.mxu0 0
    %201 = vmatprep.subr.bf16.mxu0 0
    %202 = vmatpush1.bf16.msra.mxu0 0
    %203 = vmatprep.subr.bf16.mxu0 0
    %204 = vmatpush1.bf16.msra.mxu0 0
    %205 = vmatprep.subr.bf16.mxu0 0
    %206 = vmatpush1.bf16.msra.mxu0 0
    %207 = vmatprep.subr.bf16.mxu0 0
    %208 = vmatpush1.bf16.msra.mxu0 0
    %209 = vmatprep.subr.bf16.mxu0 0
    %210 = vmatpush1.bf16.msra.mxu0 0
    %211 = vmatprep.subr.bf16.mxu0 0
    %212 = vmatpush1.bf16.msra.mxu0 0
    %213 = vmatprep.mubr.bf16.mxu0 0
    %214 = vmatmul.mubr.bf16.gmra.mrb[0].mxu0 %v44
    %v215 = vpop.f32.mrb[0].mxu0
    %v216 = vadd.f32 0.0, %v215
    %v217 = vpop.f32.mrb[0].mxu0
    %v218 = vpop.f32.mrb[0].mxu0
    %v219 = vpop.f32.mrb[0].mxu0
    %220 = vdwg.mxu0
    %v221 = vadd.f32 %v116, %v216
    %v222 = vmax.f32 %v221, 0.0
    %v223 = vpack.c.bf16 %v222, %v222
    %v224 = vld [vmem:[%s6] sm:$0xf]
    %v225 = vld [vmem:[%s6 + $0x4] sm:$0xf]
    %v226 = vld [vmem:[%s6 + $0x8] sm:$0xf]
    %v227 = vld [vmem:[%s6 + $0xc] sm:$0xf]
    %v228 = vld [vmem:[%s6 + $0x10] sm:$0xf]
    %v229 = vld [vmem:[%s6 + $0x14] sm:$0xf]
    %v230 = vld [vmem:[%s6 + $0x18] sm:$0xf]
    %v231 = vld [vmem:[%s6 + $0x1c] sm:$0xf]
    %v232 = vld [vmem:[%s6 + $0x20] sm:$0xf]
    %v233 = vld [vmem:[%s6 + $0x24] sm:$0xf]
    %v234 = vld [vmem:[%s6 + $0x28] sm:$0xf]
    %v235 = vld [vmem:[%s6 + $0x2c] sm:$0xf]
    %v236 = vld [vmem:[%s6 + $0x30] sm:$0xf]
    %v237 = vld [vmem:[%s6 + $0x34] sm:$0xf]
    %v238 = vld [vmem:[%s6 + $0x38] sm:$0xf]
    %v239 = vld [vmem:[%s6 + $0x3c] sm:$0xf]
    %v240 = vld [vmem:[%s7] sm:$0x1]
    %v242 = vlaneseq
    %v243 = vshrl.u32 %v242, 7
    %v244 = vsub.s32 0, %v243
    %v245 = vrot.slane %v240, %v244
    %v263 = vunpack.c.l.b16 %v224
    %v264 = vunpack.c.l.b16 %v225
    %v265 = vunpack.c.l.b16 %v226
    %v266 = vunpack.c.l.b16 %v227
    %v267 = vunpack.c.l.b16 %v228
    %v268 = vunpack.c.l.b16 %v229
    %v269 = vunpack.c.l.b16 %v230
    %v270 = vunpack.c.l.b16 %v231
    %v271 = vunpack.c.l.b16 %v232
    %v272 = vunpack.c.l.b16 %v233
    %v273 = vunpack.c.l.b16 %v234
    %v274 = vunpack.c.l.b16 %v235
    %v275 = vunpack.c.l.b16 %v236
    %v276 = vunpack.c.l.b16 %v237
    %v277 = vunpack.c.l.b16 %v238
    %v278 = vunpack.c.l.b16 %v239
    %v279 = vpack.c.b16 %v264, %v263
    %v280 = vpack.c.b16 %v266, %v265
    %v281 = vpack.c.b16 %v268, %v267
    %v282 = vpack.c.b16 %v270, %v269
    %v283 = vpack.c.b16 %v272, %v271
    %v284 = vpack.c.b16 %v274, %v273
    %v285 = vpack.c.b16 %v276, %v275
    %v286 = vpack.c.b16 %v278, %v277
    %295 = vmatprep.subr.bf16.mxu0 0
    %296 = vmatpush1.bf16.msra.mxu0 %v279
    %297 = vmatprep.subr.bf16.mxu0 0
    %298 = vmatpush1.bf16.msra.mxu0 %v280
    %299 = vmatprep.subr.bf16.mxu0 0
    %300 = vmatpush1.bf16.msra.mxu0 %v281
    %301 = vmatprep.subr.bf16.mxu0 0
    %302 = vmatpush1.bf16.msra.mxu0 %v282
    %303 = vmatprep.subr.bf16.mxu0 0
    %304 = vmatpush1.bf16.msra.mxu0 %v283
    %305 = vmatprep.subr.bf16.mxu0 0
    %306 = vmatpush1.bf16.msra.mxu0 %v284
    %307 = vmatprep.subr.bf16.mxu0 0
    %308 = vmatpush1.bf16.msra.mxu0 %v285
    %309 = vmatprep.subr.bf16.mxu0 0
    %310 = vmatpush1.bf16.msra.mxu0 %v286
    %311 = vmatprep.subr.bf16.mxu0 0
    %312 = vmatpush1.bf16.msra.mxu0 0
    %313 = vmatprep.subr.bf16.mxu0 0
    %314 = vmatpush1.bf16.msra.mxu0 0
    %315 = vmatprep.subr.bf16.mxu0 0
    %316 = vmatpush1.bf16.msra.mxu0 0
    %317 = vmatprep.subr.bf16.mxu0 0
    %318 = vmatpush1.bf16.msra.mxu0 0
    %319 = vmatprep.subr.bf16.mxu0 0
    %320 = vmatpush1.bf16.msra.mxu0 0
    %321 = vmatprep.subr.bf16.mxu0 0
    %322 = vmatpush1.bf16.msra.mxu0 0
    %323 = vmatprep.subr.bf16.mxu0 0
    %324 = vmatpush1.bf16.msra.mxu0 0
    %325 = vmatprep.subr.bf16.mxu0 0
    %326 = vmatpush1.bf16.msra.mxu0 0
    %327 = vmatprep.mubr.bf16.mxu0 0
    %328 = vmatmul.mubr.bf16.gmra.mrb[0].mxu0 %v223
    %v329 = vpop.f32.mrb[0].mxu0
    %v330 = vadd.f32 %v245, %v329
    %v331 = vpop.f32.mrb[0].mxu0
    %v332 = vpop.f32.mrb[0].mxu0
    %v333 = vpop.f32.mrb[0].mxu0
    %334 = vdwg.mxu0
    %v335 = vmax.f32 %v330, 0.0
    %v336 = vpack.c.bf16 %v335, %v335
    %vm337 = vcmask 253952
    %338 = vst.msk [vmem:[#allocation2] sm:$0x1] %vm337, %v336
    // Predicated region
    $region34: #{tpu_custom_call.1} parent=1 // pred_check
      _
    $region35: #{tpu_custom_call.1} parent=1 // pred_check_branch
      %340 = sbr.rel (0) target = $region37
    $region36: #{tpu_custom_call.1} parent=1 // pred_region
      %s342 = ssub.s32 16, 16
      %343 = vsyncadd [#allocation3], %s342
      %s345 = sshll.u32 [#allocation2], 4
      %s346 = int_to_ptr.vmem [resolvable:$true] %s345
      %348 = dma.vmem_to_hbm [thread:$0]  %s346, 16, %s8, [#allocation3]
    $region37: #{tpu_custom_call.1} parent=1 // pred_fallthru
      _
    // Predicated region
    $region38: #{tpu_custom_call.1} parent=1 // pred_check
      _
    $region39: #{tpu_custom_call.1} parent=1 // pred_check_branch
      %350 = sbr.rel (0) target = $region41
    $region40: #{tpu_custom_call.1} parent=1 // pred_region
      %351 = dma.done [#allocation3], 16
    $region41: #{tpu_custom_call.1} parent=1 // pred_fallthru
      _
    %352 = vsyncpa [#allocation3], 1

</llo_original>
